<compile_context>
chip_gen: v7x
topology: tpu7x:2x2x1
jax: 0.10.0
libtpu: 0.0.40
codegen_flags: <defaults>
</compile_context>

<pallas_src>
import math
import numpy as np

import jax
import jax.numpy as jnp
from jax.experimental import pallas as pl
from jax.experimental.pallas import tpu as pltpu


# ----------------------------- configuration --------------------------------
N = 2                         # batch
C, D, HH, W = 4, 4, 12, 12    # shape_input = (C, D, H, W)
AVG_POOL = (1, 6, 6)          # avg_pool_shape (divides spatial dims exactly)
KD, KH, KW = D // AVG_POOL[0], HH // AVG_POOL[1], W // AVG_POOL[2]
WIN = KD * KH * KW                      # 16 elements averaged per pooled feature
DIM_STATE = C * math.prod(AVG_POOL)     # 4 * 36 = 144
DIM_LATENT = 32
RNN_STATE_SIZE = 16
SHAPE_OUTPUT = 10
LN_EPS = 1e-5

# ----- packed-parameter slab layout (one DMA for all weights/biases) ---------
SLAB_COLS = DIM_STATE                         # 144 lanes
R_W1   = 0                                    # (144, 32)   lin1 weight (in, out)
R_WIH  = R_W1  + DIM_STATE                    # (32, 64)    LSTM W_ih^T, gates i,f,g,o
R_WHH  = R_WIH + DIM_LATENT                   # (16, 64)    LSTM W_hh^T
R_W2   = R_WHH + RNN_STATE_SIZE               # (16, 32)    lin2 weight
R_W3   = R_W2  + RNN_STATE_SIZE               # (32, 10)    lin3 weight
R_BNG  = R_W3  + DIM_LATENT                   # bn gamma   (144)
R_BNB  = R_BNG + 1                            # bn beta    (144)
R_RBNG = R_BNB + 1                            # rnn_bn gamma (32)
R_RBNB = R_RBNG + 1                           # rnn_bn beta  (32)
R_B1   = R_RBNB + 1                           # lin1 bias  (32)
R_BL   = R_B1 + 1                             # bih + bhh pre-summed (64)
R_B2   = R_BL + 1                             # lin2 bias  (32)
R_B3   = R_B2 + 1                             # lin3 bias  (10)
SLAB_ROWS = R_B3 + 1                          # 248 rows; weight blocks sublane-aligned

OUT_WIDTH = 128               # single lane-dense packed output: logits | h1 | c1
O_LOGITS = 0
O_H = 16
O_C = 32


# ------------------------------ kernel ---------------------------------------
def _stable_sigmoid(x):
    # sigmoid(x) = 0.5 * (tanh(x/2) + 1): no exp overflow, tanh goes to the EUP.
    return 0.5 * (jnp.tanh(0.5 * x) + 1.0)


def _layernorm(v, gamma, beta):
    mu = jnp.mean(v, axis=-1, keepdims=True)
    var = jnp.mean((v - mu) ** 2, axis=-1, keepdims=True)
    return (v - mu) * jax.lax.rsqrt(var + LN_EPS) * gamma + beta


def cls_kernel(xw_ref, p_ref, state_ref, out_ref):
    f32 = jnp.float32
    H = RNN_STATE_SIZE

    # AdaptiveAvgPool3d((1,6,6)): x was rearranged to (N, window=16, 144) in the
    # wrapper, so the pool is just a mean over the window axis (no pool matrix).
    pooled = jnp.mean(xw_ref[...], axis=1)                         # (N, 144)

    # self.bn = LayerNorm(dim_state)
    y = _layernorm(pooled, p_ref[R_BNG:R_BNG + 1, :], p_ref[R_BNB:R_BNB + 1, :])

    # relu(lin1(x))
    y = jnp.maximum(
        jnp.dot(y, p_ref[R_W1:R_W1 + DIM_STATE, 0:DIM_LATENT],
                preferred_element_type=f32)
        + p_ref[R_B1:R_B1 + 1, 0:DIM_LATENT], 0.0)

    # self.drop: eval-mode dropout == identity
    # TODO(synk): train-mode dropout RNG masks not reproduced (inference semantics).

    # self.rnn_bn = LayerNorm(dim_latent)
    y = _layernorm(y, p_ref[R_RBNG:R_RBNG + 1, 0:DIM_LATENT],
                   p_ref[R_RBNB:R_RBNB + 1, 0:DIM_LATENT])

    # single-layer nn.LSTM over seq_len == 1 (one cell step); gate order i,f,g,o
    h0 = state_ref[:, 0:H]
    c0 = state_ref[:, H:2 * H]
    gates = (jnp.dot(y, p_ref[R_WIH:R_WIH + DIM_LATENT, 0:4 * H],
                     preferred_element_type=f32)
             + jnp.dot(h0, p_ref[R_WHH:R_WHH + H, 0:4 * H],
                       preferred_element_type=f32)
             + p_ref[R_BL:R_BL + 1, 0:4 * H])                      # (N, 4H)
    # Full-width transcendentals once (EUP slot), then cheap per-gate lane selects.
    sig = _stable_sigmoid(gates)
    tnh = jnp.tanh(gates)
    i_g = sig[:, 0:H]
    f_g = sig[:, H:2 * H]
    g_g = tnh[:, 2 * H:3 * H]
    o_g = sig[:, 3 * H:4 * H]
    c1 = f_g * c0 + i_g * g_g
    h1 = o_g * jnp.tanh(c1)

    # relu(lin2(x)) ; drop == identity (eval)
    z = jnp.maximum(
        jnp.dot(h1, p_ref[R_W2:R_W2 + H, 0:DIM_LATENT], preferred_element_type=f32)
        + p_ref[R_B2:R_B2 + 1, 0:DIM_LATENT], 0.0)

    # lin3
    logits = (jnp.dot(z, p_ref[R_W3:R_W3 + DIM_LATENT, 0:SHAPE_OUTPUT],
                      preferred_element_type=f32)
              + p_ref[R_B3:R_B3 + 1, 0:SHAPE_OUTPUT])

    # single lane-dense (N, 128) packed output: [logits | h1 | c1 | zeros]
    out_ref[...] = jnp.zeros_like(out_ref)
    out_ref[:, O_LOGITS:O_LOGITS + SHAPE_OUTPUT] = logits
    out_ref[:, O_H:O_H + H] = h1
    out_ref[:, O_C:O_C + H] = c1


# ------------------------------ glue / params --------------------------------
def _window_major(x):
    """(N, C, D, H, W) -> (N, kd*kh*kw, C*od*oh*ow).

    Pool-window elements on the (sub)row axis, pooled features (PyTorch's
    contiguous (c, od, oh, ow) order) on the lane axis.
    """
    n = x.shape[0]
    od, oh, ow = AVG_POOL
    xr = x.reshape(n, C, od, KD, oh, KH, ow, KW)
    xr = xr.transpose(0, 3, 5, 7, 1, 2, 4, 6)   # (n, kd, kh, kw, C, od, oh, ow)
    return xr.reshape(n, WIN, DIM_STATE)


def xavier_uniform(key, fan_in, fan_out):
    limit = math.sqrt(6.0 / (fan_in + fan_out))
    # stored transposed: (in, out) so the kernel does x @ W
    return jax.random.uniform(key, (fan_in, fan_out), jnp.float32, -limit, limit)


def build_param_slab(p):
    slab = np.zeros((SLAB_ROWS, SLAB_COLS), np.float32)
    slab[R_W1:R_W1 + DIM_STATE, :DIM_LATENT] = np.asarray(p["w1"])
    slab[R_WIH:R_WIH + DIM_LATENT, :4 * RNN_STATE_SIZE] = np.asarray(p["wih"])
    slab[R_WHH:R_WHH + RNN_STATE_SIZE, :4 * RNN_STATE_SIZE] = np.asarray(p["whh"])
    slab[R_W2:R_W2 + RNN_STATE_SIZE, :DIM_LATENT] = np.asarray(p["w2"])
    slab[R_W3:R_W3 + DIM_LATENT, :SHAPE_OUTPUT] = np.asarray(p["w3"])
    slab[R_BNG, :DIM_STATE] = np.asarray(p["bn_g"])[0]
    slab[R_BNB, :DIM_STATE] = np.asarray(p["bn_b"])[0]
    slab[R_RBNG, :DIM_LATENT] = np.asarray(p["rbn_g"])[0]
    slab[R_RBNB, :DIM_LATENT] = np.asarray(p["rbn_b"])[0]
    slab[R_B1, :DIM_LATENT] = np.asarray(p["b1"])[0]
    slab[R_BL, :4 * RNN_STATE_SIZE] = np.asarray(p["bih"])[0] + np.asarray(p["bhh"])[0]
    slab[R_B2, :DIM_LATENT] = np.asarray(p["b2"])[0]
    slab[R_B3, :SHAPE_OUTPUT] = np.asarray(p["b3"])[0]
    return jnp.asarray(slab)


def init_params(seed=0):
    keys = jax.random.split(jax.random.PRNGKey(seed), 8)
    p = {
        # LayerNorm params (PyTorch default init: weight=1, bias=0)
        "bn_g": jnp.ones((1, DIM_STATE), jnp.float32),
        "bn_b": jnp.zeros((1, DIM_STATE), jnp.float32),
        "rbn_g": jnp.ones((1, DIM_LATENT), jnp.float32),
        "rbn_b": jnp.zeros((1, DIM_LATENT), jnp.float32),
        # Linears (xavier_uniform weight, zero bias), stored as (in, out)
        "w1": xavier_uniform(keys[0], DIM_STATE, DIM_LATENT),
        "b1": jnp.zeros((1, DIM_LATENT), jnp.float32),
        "w2": xavier_uniform(keys[1], RNN_STATE_SIZE, DIM_LATENT),
        "b2": jnp.zeros((1, DIM_LATENT), jnp.float32),
        "w3": xavier_uniform(keys[2], DIM_LATENT, SHAPE_OUTPUT),
        "b3": jnp.zeros((1, SHAPE_OUTPUT), jnp.float32),
        # LSTM params, stored transposed: (in, 4H) / (H, 4H); gate order i,f,g,o
        "wih": 0.1 * jax.random.normal(keys[3], (DIM_LATENT, 4 * RNN_STATE_SIZE), jnp.float32),
        "whh": 0.1 * jax.random.normal(keys[4], (RNN_STATE_SIZE, 4 * RNN_STATE_SIZE), jnp.float32),
        "bih": 0.1 * jax.random.normal(keys[5], (1, 4 * RNN_STATE_SIZE), jnp.float32),
        "bhh": 0.1 * jax.random.normal(keys[6], (1, 4 * RNN_STATE_SIZE), jnp.float32),
    }
    p["slab"] = build_param_slab(p)
    return p


def cls_forward(x, params, rnn_state=None):
    """x: (N, C, D, H, W) float32; returns (logits (N, shape_output), (h, c))."""
    n = x.shape[0]
    xw = _window_major(x.astype(jnp.float32))                       # (N, 16, 144)
    if rnn_state is None:
        state = jnp.zeros((n, 2 * RNN_STATE_SIZE), jnp.float32)
    else:
        h0 = rnn_state[0].reshape(n, RNN_STATE_SIZE)
        c0 = rnn_state[1].reshape(n, RNN_STATE_SIZE)
        state = jnp.concatenate([h0, c0], axis=-1).astype(jnp.float32)

    vmem = pl.BlockSpec(memory_space=pltpu.MemorySpace.VMEM)
    packed = pl.pallas_call(
        cls_kernel,
        out_shape=jax.ShapeDtypeStruct((n, OUT_WIDTH), jnp.float32),
        in_specs=[vmem, vmem, vmem],
        out_specs=vmem,
    )(xw, params["slab"], state)

    logits = packed[:, O_LOGITS:O_LOGITS + SHAPE_OUTPUT]
    h1 = packed[:, O_H:O_H + RNN_STATE_SIZE]
    c1 = packed[:, O_C:O_C + RNN_STATE_SIZE]
    # nn.LSTM state shape: (num_layers=1, N, H)
    return logits, (h1[None], c1[None])


# pure-JAX reference (same math, raw unpacked params) for correctness checks
def cls_forward_ref(x, p, rnn_state=None):
    n = x.shape[0]
    od, oh, ow = AVG_POOL
    xr = x.reshape(n, C, od, KD, oh, KH, ow, KW)
    pooled = xr.mean(axis=(3, 5, 7)).reshape(n, -1)

    def ln(v, g, b):
        mu = v.mean(-1, keepdims=True)
        var = ((v - mu) ** 2).mean(-1, keepdims=True)
        return (v - mu) / jnp.sqrt(var + LN_EPS) * g + b

    y = ln(pooled, p["bn_g"], p["bn_b"])
    y = jnp.maximum(y @ p["w1"] + p["b1"], 0.0)
    y = ln(y, p["rbn_g"], p["rbn_b"])
    h0 = jnp.zeros((n, RNN_STATE_SIZE)) if rnn_state is None else rnn_state[0][0]
    c0 = jnp.zeros((n, RNN_STATE_SIZE)) if rnn_state is None else rnn_state[1][0]
    g = y @ p["wih"] + p["bih"] + h0 @ p["whh"] + p["bhh"]
    Hs = RNN_STATE_SIZE
    i = jax.nn.sigmoid(g[:, :Hs]); f = jax.nn.sigmoid(g[:, Hs:2 * Hs])
    gg = jnp.tanh(g[:, 2 * Hs:3 * Hs]); o = jax.nn.sigmoid(g[:, 3 * Hs:])
    c1 = f * c0 + i * gg
    h1 = o * jnp.tanh(c1)
    z = jnp.maximum(h1 @ p["w2"] + p["b2"], 0.0)
    return z @ p["w3"] + p["b3"], (h1[None], c1[None])


if __name__ == "__main__":
    key = jax.random.PRNGKey(0)
    x = jax.random.normal(key, (N, C, D, HH, W), jnp.float32)
    params = init_params(seed=0)

    # step 1: zero initial recurrent state
    out, (h, c) = cls_forward(x, params, rnn_state=None)
    out, h, c = jax.block_until_ready((out, h, c))
    ref_out, (ref_h, ref_c) = cls_forward_ref(x, params, rnn_state=None)
    assert out.shape == (N, SHAPE_OUTPUT) and h.shape == (1, N, RNN_STATE_SIZE)
    np.testing.assert_allclose(np.asarray(out), np.asarray(ref_out), rtol=1e-4, atol=1e-5)
    np.testing.assert_allclose(np.asarray(h), np.asarray(ref_h), rtol=1e-4, atol=1e-5)
    np.testing.assert_allclose(np.asarray(c), np.asarray(ref_c), rtol=1e-4, atol=1e-5)

    # step 2: feed the recurrent state back in
    out2, (h2, c2) = cls_forward(x, params, rnn_state=(h, c))
    out2, h2, c2 = jax.block_until_ready((out2, h2, c2))
    ref_out2, (ref_h2, ref_c2) = cls_forward_ref(x, params, rnn_state=(ref_h, ref_c))
    np.testing.assert_allclose(np.asarray(out2), np.asarray(ref_out2), rtol=1e-4, atol=1e-5)
    np.testing.assert_allclose(np.asarray(h2), np.asarray(ref_h2), rtol=1e-4, atol=1e-5)
    np.testing.assert_allclose(np.asarray(c2), np.asarray(ref_c2), rtol=1e-4, atol=1e-5)

    print("KERNEL_OK")
</pallas_src>

<mosaic_0001>
module attributes {stable_mosaic.version = 11 : i64} {
  func.func @cls_kernel(%arg0: memref<2x16x144xf32, #tpu.memory_space<vmem>>, %arg1: memref<248x144xf32, #tpu.memory_space<vmem>>, %arg2: memref<2x32xf32, #tpu.memory_space<vmem>>, %arg3: memref<2x128xf32, #tpu.memory_space<vmem>>) attributes {dimension_semantics = [], scalar_prefetch = 0 : i64, scratch_operands = 0 : i64, tpu.core_type = #tpu.core_type<tc>} {
    %c0 = arith.constant 0 : index
    %c0_0 = arith.constant 0 : index
    %c0_1 = arith.constant 0 : index
    %0 = vector.load %arg0[%c0, %c0_0, %c0_1] : memref<2x16x144xf32, #tpu.memory_space<vmem>>, vector<2x16x144xf32>
    %cst = arith.constant dense<0.000000e+00> : vector<2x144xf32>
    %1 = vector.multi_reduction <add>, %0, %cst [1] : vector<2x16x144xf32> to vector<2x144xf32>
    %cst_2 = arith.constant 1.600000e+01 : f32
    %2 = vector.broadcast %cst_2 : f32 to vector<2x144xf32>
    %3 = arith.divf %1, %2 : vector<2x144xf32>
    %c240 = arith.constant 240 : index
    %c0_3 = arith.constant 0 : index
    %4 = vector.load %arg1[%c240, %c0_3] : memref<248x144xf32, #tpu.memory_space<vmem>>, vector<1x144xf32>
    %c241 = arith.constant 241 : index
    %c0_4 = arith.constant 0 : index
    %5 = vector.load %arg1[%c241, %c0_4] : memref<248x144xf32, #tpu.memory_space<vmem>>, vector<1x144xf32>
    %cst_5 = arith.constant dense<0.000000e+00> : vector<2xf32>
    %6 = vector.multi_reduction <add>, %3, %cst_5 [1] : vector<2x144xf32> to vector<2xf32>
    %7 = vector.shape_cast %6 : vector<2xf32> to vector<2x1xf32>
    %cst_6 = arith.constant 1.440000e+02 : f32
    %8 = vector.broadcast %cst_6 : f32 to vector<2x1xf32>
    %9 = arith.divf %7, %8 : vector<2x1xf32>
    %10 = vector.broadcast %9 : vector<2x1xf32> to vector<2x144xf32>
    %11 = arith.subf %3, %10 : vector<2x144xf32>
    %12 = arith.mulf %11, %11 : vector<2x144xf32>
    %cst_7 = arith.constant dense<0.000000e+00> : vector<2xf32>
    %13 = vector.multi_reduction <add>, %12, %cst_7 [1] : vector<2x144xf32> to vector<2xf32>
    %14 = vector.shape_cast %13 : vector<2xf32> to vector<2x1xf32>
    %cst_8 = arith.constant 1.440000e+02 : f32
    %15 = vector.broadcast %cst_8 : f32 to vector<2x1xf32>
    %16 = arith.divf %14, %15 : vector<2x1xf32>
    %17 = vector.broadcast %9 : vector<2x1xf32> to vector<2x144xf32>
    %18 = arith.subf %3, %17 : vector<2x144xf32>
    %cst_9 = arith.constant 9.99999974E-6 : f32
    %19 = vector.broadcast %cst_9 : f32 to vector<2x1xf32>
    %20 = arith.addf %16, %19 : vector<2x1xf32>
    %21 = math.rsqrt %20 : vector<2x1xf32>
    %22 = vector.broadcast %21 : vector<2x1xf32> to vector<2x144xf32>
    %23 = arith.mulf %18, %22 : vector<2x144xf32>
    %24 = vector.broadcast %4 : vector<1x144xf32> to vector<2x144xf32>
    %25 = arith.mulf %23, %24 : vector<2x144xf32>
    %26 = vector.broadcast %5 : vector<1x144xf32> to vector<2x144xf32>
    %27 = arith.addf %25, %26 : vector<2x144xf32>
    %c0_10 = arith.constant 0 : index
    %c0_11 = arith.constant 0 : index
    %28 = vector.load %arg1[%c0_10, %c0_11] : memref<248x144xf32, #tpu.memory_space<vmem>>, vector<144x32xf32>
    %cst_12 = arith.constant dense<0.000000e+00> : vector<2x32xf32>
    %29 = tpu.matmul %27, %28, %cst_12 {dimension_numbers = #tpu.dot_dimension_numbers<[1], [0], [0], [1], [0, 0, 1, 1], [], []>} : vector<2x144xf32>, vector<144x32xf32>, vector<2x32xf32> -> vector<2x32xf32>
    %c244 = arith.constant 244 : index
    %c0_13 = arith.constant 0 : index
    %30 = vector.load %arg1[%c244, %c0_13] : memref<248x144xf32, #tpu.memory_space<vmem>>, vector<1x32xf32>
    %31 = vector.broadcast %30 : vector<1x32xf32> to vector<2x32xf32>
    %32 = arith.addf %29, %31 : vector<2x32xf32>
    %cst_14 = arith.constant 0.000000e+00 : f32
    %33 = vector.broadcast %cst_14 : f32 to vector<2x32xf32>
    %34 = arith.maximumf %32, %33 : vector<2x32xf32>
    %c242 = arith.constant 242 : index
    %c0_15 = arith.constant 0 : index
    %35 = vector.load %arg1[%c242, %c0_15] : memref<248x144xf32, #tpu.memory_space<vmem>>, vector<1x32xf32>
    %c243 = arith.constant 243 : index
    %c0_16 = arith.constant 0 : index
    %36 = vector.load %arg1[%c243, %c0_16] : memref<248x144xf32, #tpu.memory_space<vmem>>, vector<1x32xf32>
    %cst_17 = arith.constant dense<0.000000e+00> : vector<2xf32>
    %37 = vector.multi_reduction <add>, %34, %cst_17 [1] : vector<2x32xf32> to vector<2xf32>
    %38 = vector.shape_cast %37 : vector<2xf32> to vector<2x1xf32>
    %cst_18 = arith.constant 3.200000e+01 : f32
    %39 = vector.broadcast %cst_18 : f32 to vector<2x1xf32>
    %40 = arith.divf %38, %39 : vector<2x1xf32>
    %41 = vector.broadcast %40 : vector<2x1xf32> to vector<2x32xf32>
    %42 = arith.subf %34, %41 : vector<2x32xf32>
    %43 = arith.mulf %42, %42 : vector<2x32xf32>
    %cst_19 = arith.constant dense<0.000000e+00> : vector<2xf32>
    %44 = vector.multi_reduction <add>, %43, %cst_19 [1] : vector<2x32xf32> to vector<2xf32>
    %45 = vector.shape_cast %44 : vector<2xf32> to vector<2x1xf32>
    %cst_20 = arith.constant 3.200000e+01 : f32
    %46 = vector.broadcast %cst_20 : f32 to vector<2x1xf32>
    %47 = arith.divf %45, %46 : vector<2x1xf32>
    %48 = vector.broadcast %40 : vector<2x1xf32> to vector<2x32xf32>
    %49 = arith.subf %34, %48 : vector<2x32xf32>
    %cst_21 = arith.constant 9.99999974E-6 : f32
    %50 = vector.broadcast %cst_21 : f32 to vector<2x1xf32>
    %51 = arith.addf %47, %50 : vector<2x1xf32>
    %52 = math.rsqrt %51 : vector<2x1xf32>
    %53 = vector.broadcast %52 : vector<2x1xf32> to vector<2x32xf32>
    %54 = arith.mulf %49, %53 : vector<2x32xf32>
    %55 = vector.broadcast %35 : vector<1x32xf32> to vector<2x32xf32>
    %56 = arith.mulf %54, %55 : vector<2x32xf32>
    %57 = vector.broadcast %36 : vector<1x32xf32> to vector<2x32xf32>
    %58 = arith.addf %56, %57 : vector<2x32xf32>
    %c0_22 = arith.constant 0 : index
    %c0_23 = arith.constant 0 : index
    %59 = vector.load %arg2[%c0_22, %c0_23] : memref<2x32xf32, #tpu.memory_space<vmem>>, vector<2x16xf32>
    %c0_24 = arith.constant 0 : index
    %c16 = arith.constant 16 : index
    %60 = vector.load %arg2[%c0_24, %c16] : memref<2x32xf32, #tpu.memory_space<vmem>>, vector<2x16xf32>
    %c144 = arith.constant 144 : index
    %c0_25 = arith.constant 0 : index
    %61 = vector.load %arg1[%c144, %c0_25] : memref<248x144xf32, #tpu.memory_space<vmem>>, vector<32x64xf32>
    %cst_26 = arith.constant dense<0.000000e+00> : vector<2x64xf32>
    %62 = tpu.matmul %58, %61, %cst_26 {dimension_numbers = #tpu.dot_dimension_numbers<[1], [0], [0], [1], [0, 0, 1, 1], [], []>} : vector<2x32xf32>, vector<32x64xf32>, vector<2x64xf32> -> vector<2x64xf32>
    %c176 = arith.constant 176 : index
    %c0_27 = arith.constant 0 : index
    %63 = vector.load %arg1[%c176, %c0_27] : memref<248x144xf32, #tpu.memory_space<vmem>>, vector<16x64xf32>
    %cst_28 = arith.constant dense<0.000000e+00> : vector<2x64xf32>
    %64 = tpu.matmul %59, %63, %cst_28 {dimension_numbers = #tpu.dot_dimension_numbers<[1], [0], [0], [1], [0, 0, 1, 1], [], []>} : vector<2x16xf32>, vector<16x64xf32>, vector<2x64xf32> -> vector<2x64xf32>
    %65 = arith.addf %62, %64 : vector<2x64xf32>
    %c245 = arith.constant 245 : index
    %c0_29 = arith.constant 0 : index
    %66 = vector.load %arg1[%c245, %c0_29] : memref<248x144xf32, #tpu.memory_space<vmem>>, vector<1x64xf32>
    %67 = vector.broadcast %66 : vector<1x64xf32> to vector<2x64xf32>
    %68 = arith.addf %65, %67 : vector<2x64xf32>
    %cst_30 = arith.constant 5.000000e-01 : f32
    %69 = vector.broadcast %cst_30 : f32 to vector<2x64xf32>
    %70 = arith.mulf %69, %68 : vector<2x64xf32>
    %71 = math.tanh %70 : vector<2x64xf32>
    %cst_31 = arith.constant 1.000000e+00 : f32
    %72 = vector.broadcast %cst_31 : f32 to vector<2x64xf32>
    %73 = arith.addf %71, %72 : vector<2x64xf32>
    %cst_32 = arith.constant 5.000000e-01 : f32
    %74 = vector.broadcast %cst_32 : f32 to vector<2x64xf32>
    %75 = arith.mulf %74, %73 : vector<2x64xf32>
    %76 = math.tanh %68 : vector<2x64xf32>
    %77 = vector.extract_strided_slice %75 {offsets = [0, 0], sizes = [2, 16], strides = [1, 1]} : vector<2x64xf32> to vector<2x16xf32>
    %78 = vector.extract_strided_slice %75 {offsets = [0, 16], sizes = [2, 16], strides = [1, 1]} : vector<2x64xf32> to vector<2x16xf32>
    %79 = vector.extract_strided_slice %76 {offsets = [0, 32], sizes = [2, 16], strides = [1, 1]} : vector<2x64xf32> to vector<2x16xf32>
    %80 = vector.extract_strided_slice %75 {offsets = [0, 48], sizes = [2, 16], strides = [1, 1]} : vector<2x64xf32> to vector<2x16xf32>
    %81 = arith.mulf %78, %60 : vector<2x16xf32>
    %82 = arith.mulf %77, %79 : vector<2x16xf32>
    %83 = arith.addf %81, %82 : vector<2x16xf32>
    %84 = math.tanh %83 : vector<2x16xf32>
    %85 = arith.mulf %80, %84 : vector<2x16xf32>
    %c192 = arith.constant 192 : index
    %c0_33 = arith.constant 0 : index
    %86 = vector.load %arg1[%c192, %c0_33] : memref<248x144xf32, #tpu.memory_space<vmem>>, vector<16x32xf32>
    %cst_34 = arith.constant dense<0.000000e+00> : vector<2x32xf32>
    %87 = tpu.matmul %85, %86, %cst_34 {dimension_numbers = #tpu.dot_dimension_numbers<[1], [0], [0], [1], [0, 0, 1, 1], [], []>} : vector<2x16xf32>, vector<16x32xf32>, vector<2x32xf32> -> vector<2x32xf32>
    %c246 = arith.constant 246 : index
    %c0_35 = arith.constant 0 : index
    %88 = vector.load %arg1[%c246, %c0_35] : memref<248x144xf32, #tpu.memory_space<vmem>>, vector<1x32xf32>
    %89 = vector.broadcast %88 : vector<1x32xf32> to vector<2x32xf32>
    %90 = arith.addf %87, %89 : vector<2x32xf32>
    %cst_36 = arith.constant 0.000000e+00 : f32
    %91 = vector.broadcast %cst_36 : f32 to vector<2x32xf32>
    %92 = arith.maximumf %90, %91 : vector<2x32xf32>
    %c208 = arith.constant 208 : index
    %c0_37 = arith.constant 0 : index
    %93 = vector.load %arg1[%c208, %c0_37] : memref<248x144xf32, #tpu.memory_space<vmem>>, vector<32x10xf32>
    %cst_38 = arith.constant dense<0.000000e+00> : vector<2x10xf32>
    %94 = tpu.matmul %92, %93, %cst_38 {dimension_numbers = #tpu.dot_dimension_numbers<[1], [0], [0], [1], [0, 0, 1, 1], [], []>} : vector<2x32xf32>, vector<32x10xf32>, vector<2x10xf32> -> vector<2x10xf32>
    %c247 = arith.constant 247 : index
    %c0_39 = arith.constant 0 : index
    %95 = vector.load %arg1[%c247, %c0_39] : memref<248x144xf32, #tpu.memory_space<vmem>>, vector<1x10xf32>
    %96 = vector.broadcast %95 : vector<1x10xf32> to vector<2x10xf32>
    %97 = arith.addf %94, %96 : vector<2x10xf32>
    %cst_40 = arith.constant 0.000000e+00 : f32
    %98 = vector.broadcast %cst_40 : f32 to vector<2x128xf32>
    %c0_41 = arith.constant 0 : index
    %c0_42 = arith.constant 0 : index
    %99 = vector.load %arg3[%c0_41, %c0_42] : memref<2x128xf32, #tpu.memory_space<vmem>>, vector<2x128xf32>
    tpu.vector_store %arg3[%c0_41, %c0_42], %98 {strides = array<i32>} : memref<2x128xf32, #tpu.memory_space<vmem>>, vector<2x128xf32>,
    %c0_43 = arith.constant 0 : index
    %c0_44 = arith.constant 0 : index
    %100 = vector.load %arg3[%c0_43, %c0_44] : memref<2x128xf32, #tpu.memory_space<vmem>>, vector<2x10xf32>
    tpu.vector_store %arg3[%c0_43, %c0_44], %97 {strides = array<i32>} : memref<2x128xf32, #tpu.memory_space<vmem>>, vector<2x10xf32>,
    %c0_45 = arith.constant 0 : index
    %c16_46 = arith.constant 16 : index
    %101 = vector.load %arg3[%c0_45, %c16_46] : memref<2x128xf32, #tpu.memory_space<vmem>>, vector<2x16xf32>
    tpu.vector_store %arg3[%c0_45, %c16_46], %85 {strides = array<i32>} : memref<2x128xf32, #tpu.memory_space<vmem>>, vector<2x16xf32>,
    %c0_47 = arith.constant 0 : index
    %c32 = arith.constant 32 : index
    %102 = vector.load %arg3[%c0_47, %c32] : memref<2x128xf32, #tpu.memory_space<vmem>>, vector<2x16xf32>
    tpu.vector_store %arg3[%c0_47, %c32], %83 {strides = array<i32>} : memref<2x128xf32, #tpu.memory_space<vmem>>, vector<2x16xf32>,
    return
  }
}

</mosaic_0001>

<llo_original>
// kernel: tpu_custom_call.1
$region0: #{tpu_custom_call.1}
  #allocation0 [shape = 'u32[]', space=smem, size = 0x4, offset = 0x4, fixed_abs, tag = 'smem constant byte address 0x4 - core index']
  #allocation1 [shape = 'u32[144,128]{1,0:T(1,128)}', space=vmem, size = 0x12000, scoped, tag = 'internal scratch']
  %s0 = inlined_call_operand.vmem [shape: f32[2,16,144], index: 0, kind: input, shape index: {}]
  %s1 = inlined_call_operand.vmem [shape: f32[248,144], index: 1, kind: input, shape index: {}]
  %s2 = inlined_call_operand.vmem [shape: f32[2,32], index: 2, kind: input, shape index: {}]
  %s3 = inlined_call_operand.hbm [shape: f32[2,128], index: 3, kind: output, shape index: {}]
  %s4 = sld [smem:[#allocation0]]
  $region22: #{tpu_custom_call.1} parent=0
    _
  %s6 = ssub.s32 1, %s4
  %s7 = scalar_select 0, %s6, %s4
  $region1: #{tpu_custom_call.1} parent=0
    #allocation2 [shape = 'u8[1024]{0}', space=vmem, size = 0x400, scoped, tag = 'output window, operand 0, single buffered']
    #allocation3 [shape = 's32[1]{0}', space=sflag, size = 0x4, scoped, tag = 'scoped memory for tpu_custom_call.1']
    %8 = vsyncpa [#allocation3], 0
    // Predicated region
    $region2: #{tpu_custom_call.1} parent=1 // pred_check
      _
    $region3: #{tpu_custom_call.1} parent=1 // pred_check_branch
      %10 = sbr.rel (0) target = $region5
    $region4: #{tpu_custom_call.1} parent=1 // pred_region
      _
    $region5: #{tpu_custom_call.1} parent=1 // pred_fallthru
      _
    // Predicated region
    $region6: #{tpu_custom_call.1} parent=1 // pred_check
      _
    $region7: #{tpu_custom_call.1} parent=1 // pred_check_branch
      %12 = sbr.rel (0) target = $region9
    $region8: #{tpu_custom_call.1} parent=1 // pred_region
      _
    $region9: #{tpu_custom_call.1} parent=1 // pred_fallthru
      _
    // Predicated region
    $region10: #{tpu_custom_call.1} parent=1 // pred_check
      _
    $region11: #{tpu_custom_call.1} parent=1 // pred_check_branch
      %14 = sbr.rel (0) target = $region13
    $region12: #{tpu_custom_call.1} parent=1 // pred_region
      _
    $region13: #{tpu_custom_call.1} parent=1 // pred_fallthru
      _
    %v15 = vld [vmem:[%s0] sm:$0xff]
    %v16 = vld [vmem:[%s0 + $0x8] sm:$0xff]
    %v17 = vld [vmem:[%s0 + $0x10] sm:$0xff]
    %v18 = vld [vmem:[%s0 + $0x18] sm:$0xff]
    %v19 = vld [vmem:[%s0 + $0x20] sm:$0xff]
    %v20 = vld [vmem:[%s0 + $0x28] sm:$0xff]
    %v21 = vld [vmem:[%s0 + $0x30] sm:$0xff]
    %v22 = vld [vmem:[%s0 + $0x38] sm:$0xff]
    %v23 = vadd.f32 %v15, %v17
    %v24 = vrot.slane %v23, 4
    %v25 = vadd.f32 %v23, %v24
    %v26 = vrot.slane %v25, 2
    %v27 = vadd.f32 %v25, %v26
    %v28 = vrot.slane %v27, 1
    %v29 = vadd.f32 %v27, %v28
    %vm30 = vcmask 130048
    %v31 = vsel %vm30, %v16, 0.0
    %v32 = vsel %vm30, %v18, 0.0
    %v33 = vadd.f32 %v31, %v32
    %v34 = vrot.slane %v33, 4
    %v35 = vadd.f32 %v33, %v34
    %v36 = vrot.slane %v35, 2
    %v37 = vadd.f32 %v35, %v36
    %v38 = vrot.slane %v37, 1
    %v39 = vadd.f32 %v37, %v38
    %v40 = vadd.f32 %v19, %v21
    %v41 = vrot.slane %v40, 4
    %v42 = vadd.f32 %v40, %v41
    %v43 = vrot.slane %v42, 2
    %v44 = vadd.f32 %v42, %v43
    %v45 = vrot.slane %v44, 1
    %v46 = vadd.f32 %v44, %v45
    %v47 = vsel %vm30, %v20, 0.0
    %v48 = vsel %vm30, %v22, 0.0
    %v49 = vadd.f32 %v47, %v48
    %v50 = vrot.slane %v49, 4
    %v51 = vadd.f32 %v49, %v50
    %v52 = vrot.slane %v51, 2
    %v53 = vadd.f32 %v51, %v52
    %v54 = vrot.slane %v53, 1
    %v55 = vadd.f32 %v53, %v54
    %v56 = vrcp.pop 16.0
    %v57 = vmul.f32 %v29, %v56
    %v58 = vmul.f32 %v39, %v56
    %v59 = vmul.f32 %v46, %v56
    %v60 = vmul.f32 %v55, %v56
    %s61 = scalar_lea.vmem %s1, 480
    %v62 = vld [vmem:[%s61] ss:$8 sm:$0x3]
    %s63 = scalar_lea.vmem %s1, 481
    %v64 = vld [vmem:[%s63] ss:$8 sm:$0x3]
    %vm69 = vcmask 1041409
    %v70 = vsel %vm69, %v59, %v57
    %v71 = vsel %vm69, %v60, %v58
    %vm74 = vcmask 1041408
    %v75 = vsel %vm74, %v70, 0.0
    %vm76 = vcmask 123904
    %v77 = vsel %vm76, %v71, 0.0
    %v78 = vadd.f32 %v75, %v77
    %79 = vadd.xlane.f32.xlu0 %v78
    %v80 = vpop.xlane.xlu0 %79
    %v81 = vrcp.pop 144.0
    %v82 = vmul.f32 %v80, %v81
    %v84 = vrot.slane %v82, 1
    %v87 = vsub.f32 %v57, %v82
    %v88 = vsub.f32 %v58, %v82
    %v89 = vsub.f32 %v59, %v84
    %v90 = vsub.f32 %v60, %v84
    %v91 = vmul.f32 %v87, %v87
    %v92 = vmul.f32 %v88, %v88
    %v93 = vmul.f32 %v89, %v89
    %v94 = vmul.f32 %v90, %v90
    %v99 = vrot.slane %v93, 7
    %v100 = vsel %vm69, %v99, %v91
    %v101 = vrot.slane %v94, 7
    %v102 = vsel %vm69, %v101, %v92
    %v105 = vsel %vm74, %v100, 0.0
    %v106 = vsel %vm76, %v102, 0.0
    %v107 = vadd.f32 %v105, %v106
    %108 = vadd.xlane.f32.xlu0 %v107
    %v109 = vpop.xlane.xlu0 %108
    %v110 = vmul.f32 %v109, %v81
    %v111 = vadd.f32 %v110, 1e-05
    %v112 = vrsqrt.pop %v111
    %v114 = vrot.slane %v112, 1
    %v117 = vmul.f32 %v87, %v112
    %v118 = vmul.f32 %v88, %v112
    %v119 = vmul.f32 %v89, %v114
    %v120 = vmul.f32 %v90, %v114
    %v122 = vlaneseq
    %v123 = vshrl.u32 %v122, 7
    %v124 = vsub.s32 0, %v123
    %v125 = vrot.slane %v62, %v124
    %v126 = vlaneseq
    %v127 = vshrl.u32 %v126, 7
    %v128 = vsub.s32 1, %v127
    %v129 = vrot.slane %v62, %v128
    %v132 = vmul.f32 %v117, %v125
    %v133 = vmul.f32 %v118, %v129
    %v134 = vmul.f32 %v119, %v125
    %v135 = vmul.f32 %v120, %v129
    %v137 = vlaneseq
    %v138 = vshrl.u32 %v137, 7
    %v139 = vsub.s32 0, %v138
    %v140 = vrot.slane %v64, %v139
    %v141 = vlaneseq
    %v142 = vshrl.u32 %v141, 7
    %v143 = vsub.s32 1, %v142
    %v144 = vrot.slane %v64, %v143
    %v147 = vadd.f32 %v132, %v140
    %v148 = vadd.f32 %v133, %v144
    %v149 = vadd.f32 %v134, %v140
    %v150 = vadd.f32 %v135, %v144
    %v151 = vld [vmem:[%s1] sm:$0xff]
    %v152 = vld [vmem:[%s1 + $0x10] sm:$0xff]
    %v153 = vld [vmem:[%s1 + $0x20] sm:$0xff]
    %v154 = vld [vmem:[%s1 + $0x30] sm:$0xff]
    %v155 = vld [vmem:[%s1 + $0x40] sm:$0xff]
    %v156 = vld [vmem:[%s1 + $0x50] sm:$0xff]
    %v157 = vld [vmem:[%s1 + $0x60] sm:$0xff]
    %v158 = vld [vmem:[%s1 + $0x70] sm:$0xff]
    %v159 = vld [vmem:[%s1 + $0x80] sm:$0xff]
    %v160 = vld [vmem:[%s1 + $0x90] sm:$0xff]
    %v161 = vld [vmem:[%s1 + $0xa0] sm:$0xff]
    %v162 = vld [vmem:[%s1 + $0xb0] sm:$0xff]
    %v163 = vld [vmem:[%s1 + $0xc0] sm:$0xff]
    %v164 = vld [vmem:[%s1 + $0xd0] sm:$0xff]
    %v165 = vld [vmem:[%s1 + $0xe0] sm:$0xff]
    %v166 = vld [vmem:[%s1 + $0xf0] sm:$0xff]
    %v167 = vld [vmem:[%s1 + $0x100] sm:$0xff]
    %v168 = vld [vmem:[%s1 + $0x110] sm:$0xff]
    %v169 = vld [vmem:[%s1 + $0x1e4] ss:$0 sm:$0xff]
    %v174 = vrot.slane %v149, 7
    %v175 = vsel %vm69, %v174, %v147
    %v176 = vrot.slane %v150, 7
    %v177 = vsel %vm69, %v176, %v148
    %v179 = vsel %vm30, %v177, 0
    %181 = vmatprep.subr.mxu0 0.0
    %182 = vmatpush1.msra.mxu0 %v151
    %183 = vmatprep.subr.mxu0 0.0
    %184 = vmatpush1.msra.mxu0 %v152
    %185 = vmatprep.subr.mxu0 0.0
    %186 = vmatpush1.msra.mxu0 %v153
    %187 = vmatprep.subr.mxu0 0.0
    %188 = vmatpush1.msra.mxu0 %v154
    %189 = vmatprep.subr.mxu0 0.0
    %190 = vmatpush1.msra.mxu0 %v155
    %191 = vmatprep.subr.mxu0 0.0
    %192 = vmatpush1.msra.mxu0 %v156
    %193 = vmatprep.subr.mxu0 0.0
    %194 = vmatpush1.msra.mxu0 %v157
    %195 = vmatprep.subr.mxu0 0.0
    %196 = vmatpush1.msra.mxu0 %v158
    %197 = vmatprep.subr.mxu0 0.0
    %198 = vmatpush1.msra.mxu0 %v159
    %199 = vmatprep.subr.mxu0 0.0
    %200 = vmatpush1.msra.mxu0 %v160
    %201 = vmatprep.subr.mxu0 0.0
    %202 = vmatpush1.msra.mxu0 %v161
    %203 = vmatprep.subr.mxu0 0.0
    %204 = vmatpush1.msra.mxu0 %v162
    %205 = vmatprep.subr.mxu0 0.0
    %206 = vmatpush1.msra.mxu0 %v163
    %207 = vmatprep.subr.mxu0 0.0
    %208 = vmatpush1.msra.mxu0 %v164
    %209 = vmatprep.subr.mxu0 0.0
    %210 = vmatpush1.msra.mxu0 %v165
    %211 = vmatprep.subr.mxu0 0.0
    %212 = vmatpush1.msra.mxu0 %v166
    %213 = vmatprep.subr.mxu0 0.0
    %214 = vmatpush1.msra.mxu0 %v167
    %215 = vmatprep.subr.mxu0 0.0
    %216 = vmatpush1.msra.mxu0 %v168
    %217 = vmatprep.subr.mxu0 0.0
    %218 = vmatpush1.msra.mxu0 0.0
    %219 = vmatprep.subr.mxu0 0.0
    %220 = vmatpush1.msra.mxu0 0.0
    %221 = vmatprep.subr.mxu0 0.0
    %222 = vmatpush1.msra.mxu0 0.0
    %223 = vmatprep.subr.mxu0 0.0
    %224 = vmatpush1.msra.mxu0 0.0
    %225 = vmatprep.subr.mxu0 0.0
    %226 = vmatpush1.msra.mxu0 0.0
    %227 = vmatprep.subr.mxu0 0.0
    %228 = vmatpush1.msra.mxu0 0.0
    %229 = vmatprep.subr.mxu0 0.0
    %230 = vmatpush1.msra.mxu0 0.0
    %231 = vmatprep.subr.mxu0 0.0
    %232 = vmatpush1.msra.mxu0 0.0
    %233 = vmatprep.subr.mxu0 0.0
    %234 = vmatpush1.msra.mxu0 0.0
    %235 = vmatprep.subr.mxu0 0.0
    %236 = vmatpush1.msra.mxu0 0.0
    %237 = vmatprep.subr.mxu0 0.0
    %238 = vmatpush1.msra.mxu0 0.0
    %239 = vmatprep.subr.mxu0 0.0
    %240 = vmatpush1.msra.mxu0 0.0
    %241 = vmatprep.subr.mxu0 0.0
    %242 = vmatpush1.msra.mxu0 0.0
    %243 = vmatprep.subr.mxu0 0.0
    %244 = vmatpush1.msra.mxu0 0.0
    %245 = vmatprep.mubr.f32.mxu0 %v179
    %246 = vmatmul.mubr.f32.gmra.mrb[0].mxu0 %v175
    %v247 = vpop.f32.mrb[0].mxu0
    %v248 = vadd.f32 %v169, %v247
    %v249 = vpop.f32.mrb[0].mxu0
    %250 = vdwg.mxu0
    %v251 = vmax.f32 %v248, 0.0
    %v252 = vld [vmem:[%s1 + $0x1e2] ss:$0 sm:$0xff]
    %v253 = vld [vmem:[%s1 + $0x1e3] ss:$0 sm:$0xff]
    %vm254 = vcmask 254976
    %v255 = vsel %vm254, %v251, 0.0
    %256 = vadd.xlane.f32.xlu0 %v255
    %v257 = vpop.xlane.xlu0 %256
    %v258 = vrcp.pop 32.0
    %v259 = vmul.f32 %v257, %v258
    %v260 = vsub.f32 %v251, %v259
    %v261 = vmul.f32 %v260, %v260
    %v262 = vsel %vm254, %v261, 0.0
    %263 = vadd.xlane.f32.xlu0 %v262
    %v264 = vpop.xlane.xlu0 %263
    %v265 = vmul.f32 %v264, %v258
    %v266 = vadd.f32 %v265, 1e-05
    %v267 = vrsqrt.pop %v266
    %v268 = vmul.f32 %v260, %v267
    %v269 = vmul.f32 %v268, %v252
    %v270 = vadd.f32 %v269, %v253
    %v271 = vld [vmem:[%s2] sm:$0x3]
    %v272 = vld [vmem:[%s1 + $0x120] sm:$0xff]
    %v273 = vld [vmem:[%s1 + $0x130] sm:$0xff]
    %v274 = vld [vmem:[%s1 + $0x140] sm:$0xff]
    %v275 = vld [vmem:[%s1 + $0x150] sm:$0xff]
    %v276 = vld [vmem:[%s1 + $0x160] sm:$0xff]
    %v277 = vld [vmem:[%s1 + $0x170] sm:$0xff]
    %v279 = vsel %vm30, %v271, 0
    %281 = vmatprep.subr.mxu0 0.0
    %282 = vmatpush1.msra.mxu0 %v276
    %283 = vmatprep.subr.mxu0 0.0
    %284 = vmatpush1.msra.mxu0 %v277
    %285 = vmatprep.subr.mxu0 0.0
    %286 = vmatpush1.msra.mxu0 0.0
    %287 = vmatprep.subr.mxu0 0.0
    %288 = vmatpush1.msra.mxu0 0.0
    %289 = vmatprep.subr.mxu0 0.0
    %290 = vmatpush1.msra.mxu0 0.0
    %291 = vmatprep.subr.mxu0 0.0
    %292 = vmatpush1.msra.mxu0 0.0
    %293 = vmatprep.subr.mxu0 0.0
    %294 = vmatpush1.msra.mxu0 0.0
    %295 = vmatprep.subr.mxu0 0.0
    %296 = vmatpush1.msra.mxu0 0.0
    %297 = vmatprep.subr.mxu0 0.0
    %298 = vmatpush1.msra.mxu0 0.0
    %299 = vmatprep.subr.mxu0 0.0
    %300 = vmatpush1.msra.mxu0 0.0
    %301 = vmatprep.subr.mxu0 0.0
    %302 = vmatpush1.msra.mxu0 0.0
    %303 = vmatprep.subr.mxu0 0.0
    %304 = vmatpush1.msra.mxu0 0.0
    %305 = vmatprep.subr.mxu0 0.0
    %306 = vmatpush1.msra.mxu0 0.0
    %307 = vmatprep.subr.mxu0 0.0
    %308 = vmatpush1.msra.mxu0 0.0
    %309 = vmatprep.subr.mxu0 0.0
    %310 = vmatpush1.msra.mxu0 0.0
    %311 = vmatprep.subr.mxu0 0.0
    %312 = vmatpush1.msra.mxu0 0.0
    %313 = vmatprep.subr.mxu0 0.0
    %314 = vmatpush1.msra.mxu0 0.0
    %315 = vmatprep.subr.mxu0 0.0
    %316 = vmatpush1.msra.mxu0 0.0
    %317 = vmatprep.subr.mxu0 0.0
    %318 = vmatpush1.msra.mxu0 0.0
    %319 = vmatprep.subr.mxu0 0.0
    %320 = vmatpush1.msra.mxu0 0.0
    %321 = vmatprep.subr.mxu0 0.0
    %322 = vmatpush1.msra.mxu0 0.0
    %323 = vmatprep.subr.mxu0 0.0
    %324 = vmatpush1.msra.mxu0 0.0
    %325 = vmatprep.subr.mxu0 0.0
    %326 = vmatpush1.msra.mxu0 0.0
    %327 = vmatprep.subr.mxu0 0.0
    %328 = vmatpush1.msra.mxu0 0.0
    %329 = vmatprep.subr.mxu0 0.0
    %330 = vmatpush1.msra.mxu0 0.0
    %331 = vmatprep.subr.mxu0 0.0
    %332 = vmatpush1.msra.mxu0 0.0
    %333 = vmatprep.subr.mxu0 0.0
    %334 = vmatpush1.msra.mxu0 0.0
    %335 = vmatprep.subr.mxu0 0.0
    %336 = vmatpush1.msra.mxu0 0.0
    %337 = vmatprep.subr.mxu0 0.0
    %338 = vmatpush1.msra.mxu0 0.0
    %339 = vmatprep.subr.mxu0 0.0
    %340 = vmatpush1.msra.mxu0 0.0
    %341 = vmatprep.subr.mxu0 0.0
    %342 = vmatpush1.msra.mxu0 0.0
    %343 = vmatprep.subr.mxu0 0.0
    %344 = vmatpush1.msra.mxu0 0.0
    %345 = vmatprep.mubr.f32.mxu0 0.0
    %346 = vmatmul.mubr.f32.gmra.mrb[0].mxu0 %v279
    %v347 = vpop.f32.mrb[0].mxu0
    %v348 = vadd.f32 0.0, %v347
    %v349 = vpop.f32.mrb[0].mxu0
    %350 = vdwg.mxu0
    %vm351 = vcmask 261120
    %v353 = vsel %vm351, %v270, 0
    %355 = vmatprep.subr.mxu0 0.0
    %356 = vmatpush1.msra.mxu0 %v272
    %357 = vmatprep.subr.mxu0 0.0
    %358 = vmatpush1.msra.mxu0 %v273
    %359 = vmatprep.subr.mxu0 0.0
    %360 = vmatpush1.msra.mxu0 %v274
    %361 = vmatprep.subr.mxu0 0.0
    %362 = vmatpush1.msra.mxu0 %v275
    %363 = vmatprep.subr.mxu0 0.0
    %364 = vmatpush1.msra.mxu0 0.0
    %365 = vmatprep.subr.mxu0 0.0
    %366 = vmatpush1.msra.mxu0 0.0
    %367 = vmatprep.subr.mxu0 0.0
    %368 = vmatpush1.msra.mxu0 0.0
    %369 = vmatprep.subr.mxu0 0.0
    %370 = vmatpush1.msra.mxu0 0.0
    %371 = vmatprep.subr.mxu0 0.0
    %372 = vmatpush1.msra.mxu0 0.0
    %373 = vmatprep.subr.mxu0 0.0
    %374 = vmatpush1.msra.mxu0 0.0
    %375 = vmatprep.subr.mxu0 0.0
    %376 = vmatpush1.msra.mxu0 0.0
    %377 = vmatprep.subr.mxu0 0.0
    %378 = vmatpush1.msra.mxu0 0.0
    %379 = vmatprep.subr.mxu0 0.0
    %380 = vmatpush1.msra.mxu0 0.0
    %381 = vmatprep.subr.mxu0 0.0
    %382 = vmatpush1.msra.mxu0 0.0
    %383 = vmatprep.subr.mxu0 0.0
    %384 = vmatpush1.msra.mxu0 0.0
    %385 = vmatprep.subr.mxu0 0.0
    %386 = vmatpush1.msra.mxu0 0.0
    %387 = vmatprep.subr.mxu0 0.0
    %388 = vmatpush1.msra.mxu0 0.0
    %389 = vmatprep.subr.mxu0 0.0
    %390 = vmatpush1.msra.mxu0 0.0
    %391 = vmatprep.subr.mxu0 0.0
    %392 = vmatpush1.msra.mxu0 0.0
    %393 = vmatprep.subr.mxu0 0.0
    %394 = vmatpush1.msra.mxu0 0.0
    %395 = vmatprep.subr.mxu0 0.0
    %396 = vmatpush1.msra.mxu0 0.0
    %397 = vmatprep.subr.mxu0 0.0
    %398 = vmatpush1.msra.mxu0 0.0
    %399 = vmatprep.subr.mxu0 0.0
    %400 = vmatpush1.msra.mxu0 0.0
    %401 = vmatprep.subr.mxu0 0.0
    %402 = vmatpush1.msra.mxu0 0.0
    %403 = vmatprep.subr.mxu0 0.0
    %404 = vmatpush1.msra.mxu0 0.0
    %405 = vmatprep.subr.mxu0 0.0
    %406 = vmatpush1.msra.mxu0 0.0
    %407 = vmatprep.subr.mxu0 0.0
    %408 = vmatpush1.msra.mxu0 0.0
    %409 = vmatprep.subr.mxu0 0.0
    %410 = vmatpush1.msra.mxu0 0.0
    %411 = vmatprep.subr.mxu0 0.0
    %412 = vmatpush1.msra.mxu0 0.0
    %413 = vmatprep.subr.mxu0 0.0
    %414 = vmatpush1.msra.mxu0 0.0
    %415 = vmatprep.subr.mxu0 0.0
    %416 = vmatpush1.msra.mxu0 0.0
    %417 = vmatprep.subr.mxu0 0.0
    %418 = vmatpush1.msra.mxu0 0.0
    %419 = vmatprep.mubr.f32.mxu0 0.0
    %420 = vmatmul.mubr.f32.gmra.mrb[0].mxu0 %v353
    %v421 = vpop.f32.mrb[0].mxu0
    %v422 = vadd.f32 %v348, %v421
    %v423 = vpop.f32.mrb[0].mxu0
    %424 = vdwg.mxu0
    %v425 = vld [vmem:[%s1 + $0x1e5] ss:$0 sm:$0xff]
    %v426 = vadd.f32 %v422, %v425
    %v427 = vmul.f32 %v426, 0.5
    %v428 = vtanh.pop %v427
    %v429 = vadd.f32 %v428, 1.0
    %v430 = vmul.f32 %v429, 0.5
    %v431 = vtanh.pop %v426
    %v432 = vmul.f32 %v430, %v271
    %434 = vrot.lane.b32.xlu0 %v431, 96
    %v435 = vpop.permute.xlu0 %434
    %v437 = vmul.f32 %v430, %v435
    %439 = vrot.lane.b32.xlu0 %v437, 16
    %v440 = vpop.permute.xlu0 %439
    %v442 = vadd.f32 %v432, %v440
    %v443 = vtanh.pop %v442
    %445 = vrot.lane.b32.xlu0 %v443, 32
    %v446 = vpop.permute.xlu0 %445
    %v448 = vmul.f32 %v430, %v446
    %v449 = vld [vmem:[%s1 + $0x180] sm:$0xff]
    %v450 = vld [vmem:[%s1 + $0x190] sm:$0xff]
    %v451 = vld [vmem:[%s1 + $0x1e6] ss:$0 sm:$0xff]
    %453 = vrot.lane.b32.xlu0 %v448, 80
    %v454 = vpop.permute.xlu0 %453
    %v455 = vsel %vm30, %v454, 0
    %457 = vmatprep.subr.mxu0 0.0
    %458 = vmatpush1.msra.mxu0 %v449
    %459 = vmatprep.subr.mxu0 0.0
    %460 = vmatpush1.msra.mxu0 %v450
    %461 = vmatprep.subr.mxu0 0.0
    %462 = vmatpush1.msra.mxu0 0.0
    %463 = vmatprep.subr.mxu0 0.0
    %464 = vmatpush1.msra.mxu0 0.0
    %465 = vmatprep.subr.mxu0 0.0
    %466 = vmatpush1.msra.mxu0 0.0
    %467 = vmatprep.subr.mxu0 0.0
    %468 = vmatpush1.msra.mxu0 0.0
    %469 = vmatprep.subr.mxu0 0.0
    %470 = vmatpush1.msra.mxu0 0.0
    %471 = vmatprep.subr.mxu0 0.0
    %472 = vmatpush1.msra.mxu0 0.0
    %473 = vmatprep.subr.mxu0 0.0
    %474 = vmatpush1.msra.mxu0 0.0
    %475 = vmatprep.subr.mxu0 0.0
    %476 = vmatpush1.msra.mxu0 0.0
    %477 = vmatprep.subr.mxu0 0.0
    %478 = vmatpush1.msra.mxu0 0.0
    %479 = vmatprep.subr.mxu0 0.0
    %480 = vmatpush1.msra.mxu0 0.0
    %481 = vmatprep.subr.mxu0 0.0
    %482 = vmatpush1.msra.mxu0 0.0
    %483 = vmatprep.subr.mxu0 0.0
    %484 = vmatpush1.msra.mxu0 0.0
    %485 = vmatprep.subr.mxu0 0.0
    %486 = vmatpush1.msra.mxu0 0.0
    %487 = vmatprep.subr.mxu0 0.0
    %488 = vmatpush1.msra.mxu0 0.0
    %489 = vmatprep.subr.mxu0 0.0
    %490 = vmatpush1.msra.mxu0 0.0
    %491 = vmatprep.subr.mxu0 0.0
    %492 = vmatpush1.msra.mxu0 0.0
    %493 = vmatprep.subr.mxu0 0.0
    %494 = vmatpush1.msra.mxu0 0.0
    %495 = vmatprep.subr.mxu0 0.0
    %496 = vmatpush1.msra.mxu0 0.0
    %497 = vmatprep.subr.mxu0 0.0
    %498 = vmatpush1.msra.mxu0 0.0
    %499 = vmatprep.subr.mxu0 0.0
    %500 = vmatpush1.msra.mxu0 0.0
    %501 = vmatprep.subr.mxu0 0.0
    %502 = vmatpush1.msra.mxu0 0.0
    %503 = vmatprep.subr.mxu0 0.0
    %504 = vmatpush1.msra.mxu0 0.0
    %505 = vmatprep.subr.mxu0 0.0
    %506 = vmatpush1.msra.mxu0 0.0
    %507 = vmatprep.subr.mxu0 0.0
    %508 = vmatpush1.msra.mxu0 0.0
    %509 = vmatprep.subr.mxu0 0.0
    %510 = vmatpush1.msra.mxu0 0.0
    %511 = vmatprep.subr.mxu0 0.0
    %512 = vmatpush1.msra.mxu0 0.0
    %513 = vmatprep.subr.mxu0 0.0
    %514 = vmatpush1.msra.mxu0 0.0
    %515 = vmatprep.subr.mxu0 0.0
    %516 = vmatpush1.msra.mxu0 0.0
    %517 = vmatprep.subr.mxu0 0.0
    %518 = vmatpush1.msra.mxu0 0.0
    %519 = vmatprep.subr.mxu0 0.0
    %520 = vmatpush1.msra.mxu0 0.0
    %521 = vmatprep.mubr.f32.mxu0 0.0
    %522 = vmatmul.mubr.f32.gmra.mrb[0].mxu0 %v455
    %v523 = vpop.f32.mrb[0].mxu0
    %v524 = vadd.f32 %v451, %v523
    %v525 = vpop.f32.mrb[0].mxu0
    %526 = vdwg.mxu0
    %v527 = vmax.f32 %v524, 0.0
    %v528 = vld [vmem:[%s1 + $0x1a0] sm:$0xff]
    %v529 = vld [vmem:[%s1 + $0x1b0] sm:$0xff]
    %v530 = vld [vmem:[%s1 + $0x1c0] sm:$0xff]
    %v531 = vld [vmem:[%s1 + $0x1d0] sm:$0xff]
    %v532 = vld [vmem:[%s1 + $0x1e7] ss:$0 sm:$0xff]
    %v534 = vsel %vm351, %v527, 0
    %536 = vmatprep.subr.mxu0 0.0
    %537 = vmatpush1.msra.mxu0 %v528
    %538 = vmatprep.subr.mxu0 0.0
    %539 = vmatpush1.msra.mxu0 %v529
    %540 = vmatprep.subr.mxu0 0.0
    %541 = vmatpush1.msra.mxu0 %v530
    %542 = vmatprep.subr.mxu0 0.0
    %543 = vmatpush1.msra.mxu0 %v531
    %544 = vmatprep.subr.mxu0 0.0
    %545 = vmatpush1.msra.mxu0 0.0
    %546 = vmatprep.subr.mxu0 0.0
    %547 = vmatpush1.msra.mxu0 0.0
    %548 = vmatprep.subr.mxu0 0.0
    %549 = vmatpush1.msra.mxu0 0.0
    %550 = vmatprep.subr.mxu0 0.0
    %551 = vmatpush1.msra.mxu0 0.0
    %552 = vmatprep.subr.mxu0 0.0
    %553 = vmatpush1.msra.mxu0 0.0
    %554 = vmatprep.subr.mxu0 0.0
    %555 = vmatpush1.msra.mxu0 0.0
    %556 = vmatprep.subr.mxu0 0.0
    %557 = vmatpush1.msra.mxu0 0.0
    %558 = vmatprep.subr.mxu0 0.0
    %559 = vmatpush1.msra.mxu0 0.0
    %560 = vmatprep.subr.mxu0 0.0
    %561 = vmatpush1.msra.mxu0 0.0
    %562 = vmatprep.subr.mxu0 0.0
    %563 = vmatpush1.msra.mxu0 0.0
    %564 = vmatprep.subr.mxu0 0.0
    %565 = vmatpush1.msra.mxu0 0.0
    %566 = vmatprep.subr.mxu0 0.0
    %567 = vmatpush1.msra.mxu0 0.0
    %568 = vmatprep.subr.mxu0 0.0
    %569 = vmatpush1.msra.mxu0 0.0
    %570 = vmatprep.subr.mxu0 0.0
    %571 = vmatpush1.msra.mxu0 0.0
    %572 = vmatprep.subr.mxu0 0.0
    %573 = vmatpush1.msra.mxu0 0.0
    %574 = vmatprep.subr.mxu0 0.0
    %575 = vmatpush1.msra.mxu0 0.0
    %576 = vmatprep.subr.mxu0 0.0
    %577 = vmatpush1.msra.mxu0 0.0
    %578 = vmatprep.subr.mxu0 0.0
    %579 = vmatpush1.msra.mxu0 0.0
    %580 = vmatprep.subr.mxu0 0.0
    %581 = vmatpush1.msra.mxu0 0.0
    %582 = vmatprep.subr.mxu0 0.0
    %583 = vmatpush1.msra.mxu0 0.0
    %584 = vmatprep.subr.mxu0 0.0
    %585 = vmatpush1.msra.mxu0 0.0
    %586 = vmatprep.subr.mxu0 0.0
    %587 = vmatpush1.msra.mxu0 0.0
    %588 = vmatprep.subr.mxu0 0.0
    %589 = vmatpush1.msra.mxu0 0.0
    %590 = vmatprep.subr.mxu0 0.0
    %591 = vmatpush1.msra.mxu0 0.0
    %592 = vmatprep.subr.mxu0 0.0
    %593 = vmatpush1.msra.mxu0 0.0
    %594 = vmatprep.subr.mxu0 0.0
    %595 = vmatpush1.msra.mxu0 0.0
    %596 = vmatprep.subr.mxu0 0.0
    %597 = vmatpush1.msra.mxu0 0.0
    %598 = vmatprep.subr.mxu0 0.0
    %599 = vmatpush1.msra.mxu0 0.0
    %600 = vmatprep.mubr.f32.mxu0 0.0
    %601 = vmatmul.mubr.f32.gmra.mrb[0].mxu0 %v534
    %v602 = vpop.f32.mrb[0].mxu0
    %v603 = vadd.f32 %v532, %v602
    %v604 = vpop.f32.mrb[0].mxu0
    %605 = vdwg.mxu0
    %606 = vst [vmem:[#allocation2] sm:$0x3] 0.0
    %vm607 = vcmask 74752
    %608 = vst.msk [vmem:[#allocation2] sm:$0x3] %vm607, %v603
    %609 = vrot.lane.b32.xlu0 %v448, 96
    %v610 = vpop.permute.xlu0 %609
    %vm612 = vcmask 255104
    %613 = vst.msk [vmem:[#allocation2] sm:$0x3] %vm612, %v610
    %615 = vrot.lane.b32.xlu0 %v442, 16
    %v616 = vpop.permute.xlu0 %615
    %vm618 = vcmask 386304
    %619 = vst.msk [vmem:[#allocation2] sm:$0x3] %vm618, %v616
    // Predicated region
    $region14: #{tpu_custom_call.1} parent=1 // pred_check
      _
    $region15: #{tpu_custom_call.1} parent=1 // pred_check_branch
      %621 = sbr.rel (0) target = $region17
    $region16: #{tpu_custom_call.1} parent=1 // pred_region
      %s623 = ssub.s32 32, 32
      %624 = vsyncadd [#allocation3], %s623
      %s626 = sshll.u32 [#allocation2], 4
      %s627 = int_to_ptr.vmem [resolvable:$true] %s626
      %629 = dma.vmem_to_hbm [thread:$0]  %s627, 32, %s3, [#allocation3]
    $region17: #{tpu_custom_call.1} parent=1 // pred_fallthru
      _
    // Predicated region
    $region18: #{tpu_custom_call.1} parent=1 // pred_check
      _
    $region19: #{tpu_custom_call.1} parent=1 // pred_check_branch
      %631 = sbr.rel (0) target = $region21
    $region20: #{tpu_custom_call.1} parent=1 // pred_region
      %632 = dma.done [#allocation3], 32
    $region21: #{tpu_custom_call.1} parent=1 // pred_fallthru
      _
    %633 = vsyncpa [#allocation3], 1

</llo_original>
